<compile_context>
chip_gen: v5e
topology: v5e:2x2
jax: 0.10.0
libtpu: 0.0.40
codegen_flags: <defaults>
</compile_context>

<pallas_src>
import functools

import jax
import jax.numpy as jnp
from jax import lax
from jax.experimental import pallas as pl
from jax.experimental.pallas import tpu as pltpu


@functools.lru_cache(maxsize=1)
def _vmem_limit_bytes():
    """Generation-aware scoped-VMEM limit (~half of physical, capped at 64 MiB)."""
    try:
        cap = int(pltpu.get_tpu_info().vmem_capacity_bytes)
        return int(min(64 * 1024 * 1024, max(cap // 2, 16 * 1024 * 1024)))
    except Exception:
        return 32 * 1024 * 1024          # safe on every generation


# --------------------------------------------------------------------------
# Pallas kernel 1: 3x3 average pool, stride 1, pad 1 (count_include_pad=True,
# divisor always 9 — matches F.avg_pool2d defaults).  NHWC layout, channels on
# lanes.  Scratch is padded along H only; W-neighbour sums use XLU rolls.
# --------------------------------------------------------------------------
def _avg_pool3x3_kernel(x_ref, o_ref, xp_ref, *, scale):
    # x_ref : (1, H, W, TC)  input block (bf16; C on lanes, W on sublanes)
    # o_ref : (1, H, W, TC)  output block (bf16)
    # xp_ref: (H+2, W, TC)   f32 scratch, zero halo rows along H only
    H, W, TC = x_ref.shape[1], x_ref.shape[2], x_ref.shape[3]
    zrow = jnp.zeros((1, W, TC), jnp.float32)
    # Zero ONLY the halo rows (the interior is fully overwritten right after).
    # Kept per-step (not under pl.when) so v7x megacore per-core scratch stays valid.
    xp_ref[0:1] = zrow
    xp_ref[H + 1:H + 2] = zrow
    xp_ref[1:H + 1] = x_ref[0].astype(jnp.float32)     # sublane-aligned interior store

    xp = xp_ref[...]
    # H-neighbour sum via leading-dim slices (free address offsets).
    col = xp[0:H] + xp[1:H + 1] + xp[2:H + 2]          # (H, W, TC)
    # W-neighbour sum via XLU rolls + edge masks (no masked sublane stores).
    left = pltpu.roll(col, shift=1, axis=1)            # value from w-1 (wraps at w=0)
    right = pltpu.roll(col, shift=W - 1, axis=1)       # value from w+1 (wraps at w=W-1)
    w_idx = lax.broadcasted_iota(jnp.int32, col.shape, 1)
    left = jnp.where(w_idx == 0, 0.0, left)
    right = jnp.where(w_idx == W - 1, 0.0, right)
    o_ref[0] = ((col + left + right) * scale).astype(o_ref.dtype)


def _pick_channel_tile(C, H, W, B, budget_bytes):
    """Channel tile: multiple of 128 dividing C (else full C), fitting VMEM,
    preferring >=4 total grid steps (B * C_tiles)."""
    # dbl-buffered bf16 in + bf16 out blocks + f32 H-padded scratch, per channel
    per_c = 2 * H * W * 2 + 2 * H * W * 2 + (H + 2) * W * 4
    cap = max(1, budget_bytes // per_c)
    cands = [t for t in range(128, min(C, cap) + 1, 128) if C % t == 0]
    if not cands:
        return C                                   # full-C block (always a legal dim)
    min_ct = -(-4 // max(B, 1))                    # ceil(4 / B)
    good = [t for t in cands if C // t >= min_ct]
    return max(good) if good else min(cands)


def avg_pool3x3_nhwc(x, *, scale):
    """x: (B, H, W, C) -> (B, H, W, C) bfloat16 ; (3x3, stride 1, pad 1) avg pool * scale."""
    B, H, W, C = x.shape
    vmem_limit = _vmem_limit_bytes()
    tc = _pick_channel_tile(C, H, W, B, int(vmem_limit * 0.6))
    kern = functools.partial(_avg_pool3x3_kernel, scale=float(scale))
    return pl.pallas_call(
        kern,
        out_shape=jax.ShapeDtypeStruct((B, H, W, C), jnp.bfloat16),
        grid=(B, C // tc),
        in_specs=[pl.BlockSpec((1, H, W, tc), lambda b, c: (b, 0, 0, c))],
        out_specs=pl.BlockSpec((1, H, W, tc), lambda b, c: (b, 0, 0, c)),
        scratch_shapes=[pltpu.VMEM((H + 2, W, tc), jnp.float32)],
        compiler_params=pltpu.CompilerParams(
            dimension_semantics=("parallel", "parallel"),
            vmem_limit_bytes=vmem_limit),
    )(x)


# --------------------------------------------------------------------------
# Pallas kernel 2: optional sigmoid + CoordConv 1x1 conv, multi-level fused.
#   out = sum_l sigmoid(level_l)_bf16 @ W_l_bf16   (f32 accumulate)
#         + (coords @ W_coord + bias)              (precomputed, batch-independent)
# The levels are NOT concatenated in HBM; the 1x1 weight is split by channel
# range and all per-level matmuls are accumulated inside one grid step.
# --------------------------------------------------------------------------
def _coordconv1x1_kernel(*refs, n_levels, apply_sigmoid, tb, tile_s):
    x_refs = refs[:n_levels]                       # each (tb, tile_s, C_l) bf16
    w_refs = refs[n_levels:2 * n_levels]           # each (C_l, Cout_pad)   bf16
    ct_ref = refs[2 * n_levels]                    # (tile_s, Cout_pad) or (1, Cout_pad) f32
    o_ref = refs[2 * n_levels + 1]                 # (tb, tile_s, Cout_pad) f32
    cout = o_ref.shape[-1]
    rows = tb * tile_s

    acc = jnp.zeros((rows, cout), jnp.float32)
    for xr, wr in zip(x_refs, w_refs):
        x = xr[...].reshape(rows, xr.shape[-1])
        if apply_sigmoid:
            # sigmoid in f32 (portable to v5e's f32-only EUP), matmul in bf16
            x = jax.nn.sigmoid(x.astype(jnp.float32)).astype(jnp.bfloat16)
        acc = acc + jnp.dot(x, wr[...], preferred_element_type=jnp.float32)

    out = acc.reshape(tb, tile_s, cout) + ct_ref[...]    # ct broadcasts over tb / rows
    o_ref[...] = out.astype(o_ref.dtype)


def _pick_rowbatch_tiles(HW, B, sum_c, cout_pad, budget_bytes):
    """(tile_s, tb): row tile (divisor of HW) and batch fold (divisor of B).
    Prefers >=4 grid steps, then larger M=tb*tile_s, then fewer ct re-fetches,
    accounting for the double-buffered weight block in the VMEM budget."""
    fixed = 2 * sum_c * cout_pad * 2                     # dbl-buffered bf16 weights
    avail = max(budget_bytes - fixed, 1 << 20)
    per_row = 2 * sum_c * 2 + 2 * cout_pad * 4           # dbl-buf bf16 in + f32 out
    per_ts = 2 * cout_pad * 4                            # dbl-buf f32 ct (per tile_s row)

    ts_cands = [t for t in range(8, HW + 1, 8) if HW % t == 0] or [HW]
    tb_cands = [t for t in range(1, B + 1) if B % t == 0]

    best = None                                          # (key, ts, tb)
    for ts in ts_cands:
        for tb in tb_cands:
            if tb > 1 and ts % 8 != 0:
                continue
            rows = ts * tb
            if rows > 2048:
                continue
            if rows * per_row + ts * per_ts > avail:
                continue
            steps = (HW // ts) * (B // tb)
            key = (min(steps, 4), rows, ts)
            if best is None or key > best[0]:
                best = (key, ts, tb)
    if best is None:
        return ts_cands[0], 1
    return best[1], best[2]


def coordconv1x1_multilevel(level_rows, w_chunks, coord_term, *, apply_sigmoid):
    """level_rows: list of (B, HW, C_l) bf16; w_chunks: list of (C_l, Cout_pad) bf16;
    coord_term: (HW, Cout_pad) or (1, Cout_pad) f32.  Returns (B, HW, Cout_pad) f32."""
    B, HW, _ = level_rows[0].shape
    c_sizes = [x.shape[2] for x in level_rows]
    cout_pad = w_chunks[0].shape[1]
    n_levels = len(level_rows)
    sum_c = sum(c_sizes)

    vmem_limit = _vmem_limit_bytes()
    tile_s, tb = _pick_rowbatch_tiles(HW, B, sum_c, cout_pad, int(vmem_limit * 0.75))
    n_s, n_b = HW // tile_s, B // tb

    # Grid order: rows OUTER, batch INNER -> ct / weight block indices stay
    # constant across the inner batch steps, so their DMAs are skipped.
    x_specs = [pl.BlockSpec((tb, tile_s, c), lambda s, b: (b, s, 0)) for c in c_sizes]
    w_specs = [pl.BlockSpec((c, cout_pad), lambda s, b: (0, 0)) for c in c_sizes]
    if coord_term.shape[0] > 1:                          # add_coord=True
        ct_spec = pl.BlockSpec((tile_s, cout_pad), lambda s, b: (s, 0))
    else:                                                # bias only
        ct_spec = pl.BlockSpec((1, cout_pad), lambda s, b: (0, 0))

    kern = functools.partial(_coordconv1x1_kernel, n_levels=n_levels,
                             apply_sigmoid=apply_sigmoid, tb=tb, tile_s=tile_s)
    return pl.pallas_call(
        kern,
        out_shape=jax.ShapeDtypeStruct((B, HW, cout_pad), jnp.float32),
        grid=(n_s, n_b),
        in_specs=x_specs + w_specs + [ct_spec],
        out_specs=pl.BlockSpec((tb, tile_s, cout_pad), lambda s, b: (b, s, 0)),
        compiler_params=pltpu.CompilerParams(
            dimension_semantics=("parallel", "parallel"),
            vmem_limit_bytes=vmem_limit),
    )(*level_rows, *w_chunks, coord_term)


# --------------------------------------------------------------------------
# Descriptor module (JAX/Pallas version)
# --------------------------------------------------------------------------
class DescriptorPallas:
    _DIMS = {"wrn50_2": 1792, "res18": 448, "effnet-b5": 568, "vgg19": 1280}

    def __init__(self, gamma_d, add_coord, cnn, sigmoid, avg_pooling, key):
        dim = self._DIMS[cnn]
        out_dim = (2 * dim // gamma_d) if cnn == "effnet-b5" else (dim // gamma_d)
        self.cnn = cnn
        self.dim = dim
        self.add_coord = bool(add_coord)
        self.sigmoid_backbone = bool(sigmoid)
        self.avg_pooling = bool(avg_pooling)
        self.out_dim = out_dim
        # 128 lanes when small; multiple of 256 when larger (full-width v6e/v7x MXU passes).
        self.out_dim_pad = 128 if out_dim <= 128 else ((out_dim + 255) // 256) * 256

        # Deterministic Conv2d(dim+2 -> out_dim, kernel=1) init (uniform, fan-in),
        # output columns zero-padded to out_dim_pad.
        in_dim = dim + 2
        k1, k2 = jax.random.split(key)
        scale = 1.0 / jnp.sqrt(jnp.float32(in_dim))
        w_full = jax.random.uniform(k1, (in_dim, out_dim), jnp.float32, -scale, scale)
        b = jax.random.uniform(k2, (1, out_dim), jnp.float32, -scale, scale)
        pad = self.out_dim_pad - out_dim
        w_full = jnp.pad(w_full, ((0, 0), (0, pad)))
        self.w_feat = w_full[:dim].astype(jnp.bfloat16)   # (dim, out_pad) bf16 MXU weights
        self.w_coord = w_full[dim:]                       # (2,   out_pad) f32
        self.bias = jnp.pad(b, ((0, 0), (0, pad)))        # (1,   out_pad) f32

    def _coord_bias_term(self, H, W):
        """Batch-independent coords @ W_coord + bias, shape (H*W, out_pad);
        just the (1, out_pad) bias when add_coord=False."""
        if not self.add_coord:
            return self.bias
        # TODO(synk): CoordConv2d source not provided; standard normalized [-1, 1]
        # xx-over-W / yy-over-H coordinate channels assumed.
        xx = (jnp.arange(W, dtype=jnp.float32) / max(W - 1, 1)) * 2.0 - 1.0
        yy = (jnp.arange(H, dtype=jnp.float32) / max(H - 1, 1)) * 2.0 - 1.0
        xx_map = jnp.broadcast_to(xx[None, :], (H, W))
        yy_map = jnp.broadcast_to(yy[:, None], (H, W))
        coords = jnp.stack([xx_map, yy_map], axis=-1).reshape(H * W, 2)
        return coords @ self.w_coord + self.bias

    def __call__(self, p):
        levels = []
        tgt_h = tgt_w = None
        for o in p:
            # NCHW -> NHWC in bf16 (halves transpose writeback + downstream HBM traffic).
            # TODO(synk): fusing this transpose into the pool kernel left to XLA glue.
            o = jnp.transpose(o, (0, 2, 3, 1)).astype(jnp.bfloat16)
            if self.avg_pooling:
                scale = 1.0 / 9.0
                if self.cnn == "effnet-b5":
                    scale = scale / o.shape[-1]            # F.avg_pool2d(o,3,1,1) / o.size(1)
                o = avg_pool3x3_nhwc(o, scale=scale)       # bf16 out
            if tgt_h is None:
                tgt_h, tgt_w = o.shape[1], o.shape[2]
            elif o.shape[1] != tgt_h or o.shape[2] != tgt_w:
                # torch: F.interpolate(o, sample.size(2), mode='bilinear') (square target);
                # bilinear resize (align_corners=False) left to XLA glue.
                o = jax.image.resize(o, (o.shape[0], tgt_h, tgt_w, o.shape[3]),
                                     method="bilinear", antialias=False)
            levels.append(o)

        B = levels[0].shape[0]
        HW = tgt_h * tgt_w
        level_rows = [l.reshape(B, HW, l.shape[3]) for l in levels]     # free reshapes
        c_sizes = [l.shape[2] for l in level_rows]
        assert sum(c_sizes) == self.dim, "backbone channel sum does not match cnn dim"

        # Split the 1x1 weight by level channel range (no HBM concat of the sample).
        w_chunks, off = [], 0
        for c in c_sizes:
            w_chunks.append(self.w_feat[off:off + c])
            off += c

        out = coordconv1x1_multilevel(
            level_rows, w_chunks, self._coord_bias_term(tgt_h, tgt_w),
            apply_sigmoid=self.sigmoid_backbone)

        phi_nhwc = out[:, :, :self.out_dim].reshape(B, tgt_h, tgt_w, self.out_dim)
        # NCHW only at the module boundary to match the PyTorch Descriptor output.
        return jnp.transpose(phi_nhwc, (0, 3, 1, 2))


if __name__ == "__main__":
    key = jax.random.PRNGKey(0)
    k0, k1, k2, kparam = jax.random.split(key, 4)

    # res18 backbone features (layer1/2/3): channels 64+128+256 = 448 = dim.
    B = 2
    p = [
        jax.random.normal(k0, (B, 64, 16, 16), jnp.float32),
        jax.random.normal(k1, (B, 128, 8, 8), jnp.float32),
        jax.random.normal(k2, (B, 256, 4, 4), jnp.float32),
    ]

    desc = DescriptorPallas(gamma_d=8, add_coord=True, cnn="res18",
                            sigmoid=True, avg_pooling=True, key=kparam)
    phi_p = desc(p)                      # (B, 448//8, 16, 16) = (2, 56, 16, 16)
    jax.block_until_ready(phi_p)
    assert phi_p.shape == (B, 56, 16, 16)
    print("KERNEL_OK")
</pallas_src>

<mosaic_0001>
module attributes {stable_mosaic.version = 11 : i64} {
  func.func @_avg_pool3x3_kernel(%arg0: i32, %arg1: i32, %arg2: memref<1x16x16x64xbf16, #tpu.memory_space<vmem>>, %arg3: memref<1x16x16x64xbf16, #tpu.memory_space<vmem>>, %arg4: memref<18x16x64xf32, #tpu.memory_space<vmem>>) attributes {dimension_semantics = [#tpu.dimension_semantics<parallel>, #tpu.dimension_semantics<parallel>], iteration_bounds = array<i64: 2, 1>, scalar_prefetch = 0 : i64, scratch_operands = 1 : i64, tpu.core_type = #tpu.core_type<tc>, window_params = [{transform_indices = @transform_0, window_bounds = array<i64: 1, 16, 16, 64>}, {transform_indices = @transform_1, window_bounds = array<i64: 1, 16, 16, 64>}]} {
    %cst = arith.constant 0.000000e+00 : f32
    %0 = vector.broadcast %cst : f32 to vector<1x16x64xf32>
    %c0 = arith.constant 0 : index
    %c0_0 = arith.constant 0 : index
    %c0_1 = arith.constant 0 : index
    %1 = vector.load %arg4[%c0, %c0_0, %c0_1] : memref<18x16x64xf32, #tpu.memory_space<vmem>>, vector<1x16x64xf32>
    tpu.vector_store %arg4[%c0, %c0_0, %c0_1], %0 {strides = array<i32>} : memref<18x16x64xf32, #tpu.memory_space<vmem>>, vector<1x16x64xf32>,
    %c17 = arith.constant 17 : index
    %c0_2 = arith.constant 0 : index
    %c0_3 = arith.constant 0 : index
    %2 = vector.load %arg4[%c17, %c0_2, %c0_3] : memref<18x16x64xf32, #tpu.memory_space<vmem>>, vector<1x16x64xf32>
    tpu.vector_store %arg4[%c17, %c0_2, %c0_3], %0 {strides = array<i32>} : memref<18x16x64xf32, #tpu.memory_space<vmem>>, vector<1x16x64xf32>,
    %c0_4 = arith.constant 0 : index
    %c0_5 = arith.constant 0 : index
    %c0_6 = arith.constant 0 : index
    %c0_7 = arith.constant 0 : index
    %3 = vector.load %arg2[%c0_4, %c0_5, %c0_6, %c0_7] : memref<1x16x16x64xbf16, #tpu.memory_space<vmem>>, vector<1x16x16x64xbf16>
    %4 = vector.shape_cast %3 : vector<1x16x16x64xbf16> to vector<16x16x64xbf16>
    %5 = arith.extf %4 : vector<16x16x64xbf16> to vector<16x16x64xf32>
    %c1 = arith.constant 1 : index
    %c0_8 = arith.constant 0 : index
    %c0_9 = arith.constant 0 : index
    %6 = vector.load %arg4[%c1, %c0_8, %c0_9] : memref<18x16x64xf32, #tpu.memory_space<vmem>>, vector<16x16x64xf32>
    tpu.vector_store %arg4[%c1, %c0_8, %c0_9], %5 {strides = array<i32>} : memref<18x16x64xf32, #tpu.memory_space<vmem>>, vector<16x16x64xf32>,
    %c0_10 = arith.constant 0 : index
    %c0_11 = arith.constant 0 : index
    %c0_12 = arith.constant 0 : index
    %7 = vector.load %arg4[%c0_10, %c0_11, %c0_12] : memref<18x16x64xf32, #tpu.memory_space<vmem>>, vector<18x16x64xf32>
    %8 = vector.extract_strided_slice %7 {offsets = [0, 0, 0], sizes = [16, 16, 64], strides = [1, 1, 1]} : vector<18x16x64xf32> to vector<16x16x64xf32>
    %9 = vector.extract_strided_slice %7 {offsets = [1, 0, 0], sizes = [16, 16, 64], strides = [1, 1, 1]} : vector<18x16x64xf32> to vector<16x16x64xf32>
    %10 = arith.addf %8, %9 : vector<16x16x64xf32>
    %11 = vector.extract_strided_slice %7 {offsets = [2, 0, 0], sizes = [16, 16, 64], strides = [1, 1, 1]} : vector<18x16x64xf32> to vector<16x16x64xf32>
    %12 = arith.addf %10, %11 : vector<16x16x64xf32>
    %c1_i32 = arith.constant 1 : i32
    %13 = tpu.dynamic_rotate %12 by %c1_i32 dim 1 : vector<16x16x64xf32>, i32 -> vector<16x16x64xf32>
    %c15_i32 = arith.constant 15 : i32
    %14 = tpu.dynamic_rotate %12 by %c15_i32 dim 1 : vector<16x16x64xf32>, i32 -> vector<16x16x64xf32>
    %15 = tpu.iota {dimensions = array<i32: 1>} : vector<16x16x64xi32>
    %c0_i32 = arith.constant 0 : i32
    %16 = vector.broadcast %c0_i32 : i32 to vector<16x16x64xi32>
    %17 = arith.cmpi eq, %15, %16 : vector<16x16x64xi32>
    %cst_13 = arith.constant 0.000000e+00 : f32
    %18 = vector.broadcast %cst_13 : f32 to vector<16x16x64xf32>
    %19 = arith.select %17, %18, %13 : vector<16x16x64xi1>, vector<16x16x64xf32>
    %c15_i32_14 = arith.constant 15 : i32
    %20 = vector.broadcast %c15_i32_14 : i32 to vector<16x16x64xi32>
    %21 = arith.cmpi eq, %15, %20 : vector<16x16x64xi32>
    %cst_15 = arith.constant 0.000000e+00 : f32
    %22 = vector.broadcast %cst_15 : f32 to vector<16x16x64xf32>
    %23 = arith.select %21, %22, %14 : vector<16x16x64xi1>, vector<16x16x64xf32>
    %24 = arith.addf %12, %19 : vector<16x16x64xf32>
    %25 = arith.addf %24, %23 : vector<16x16x64xf32>
    %cst_16 = arith.constant 0.111111112 : f32
    %26 = vector.broadcast %cst_16 : f32 to vector<16x16x64xf32>
    %27 = arith.mulf %25, %26 : vector<16x16x64xf32>
    %28 = arith.truncf %27 : vector<16x16x64xf32> to vector<16x16x64xbf16>
    %c0_17 = arith.constant 0 : index
    %c0_18 = arith.constant 0 : index
    %c0_19 = arith.constant 0 : index
    %c0_20 = arith.constant 0 : index
    %29 = vector.load %arg3[%c0_17, %c0_18, %c0_19, %c0_20] : memref<1x16x16x64xbf16, #tpu.memory_space<vmem>>, vector<1x16x16x64xbf16>
    %30 = vector.shape_cast %29 : vector<1x16x16x64xbf16> to vector<16x16x64xbf16>
    %31 = vector.shape_cast %28 : vector<16x16x64xbf16> to vector<1x16x16x64xbf16>
    tpu.vector_store %arg3[%c0_17, %c0_18, %c0_19, %c0_20], %31 {strides = array<i32>} : memref<1x16x16x64xbf16, #tpu.memory_space<vmem>>, vector<1x16x16x64xbf16>,
    return
  }
  func.func @transform_0(%arg0: i32, %arg1: i32) -> (i32, i32, i32, i32) {
    %c0_i32 = arith.constant 0 : i32
    %c0_i32_0 = arith.constant 0 : i32
    %c0_i32_1 = arith.constant 0 : i32
    return %arg0, %c0_i32, %c0_i32_0, %arg1 : i32, i32, i32, i32
  }
  func.func @transform_1(%arg0: i32, %arg1: i32) -> (i32, i32, i32, i32) {
    %c0_i32 = arith.constant 0 : i32
    %c0_i32_0 = arith.constant 0 : i32
    %c0_i32_1 = arith.constant 0 : i32
    return %arg0, %c0_i32, %c0_i32_0, %arg1 : i32, i32, i32, i32
  }
}

</mosaic_0001>

<llo_original>
// kernel: tpu_custom_call.1
$region0: #{tpu_custom_call.1}
  #allocation0 [shape = 'u32[]', space=smem, size = 0x4, offset = 0x4, fixed_abs, tag = 'smem constant byte address 0x4 - core index']
  #allocation1 [shape = 'u32[72,128]{1,0:T(1,128)}', space=vmem, size = 0x9000, scoped, tag = 'internal scratch']
  #allocation2 [shape = 'f32[18,16,64]{2,1,0:T(8,128)}', space=vmem, size = 0x24000, scoped, tag = 'scratch operand']
  %s0 = inlined_call_operand.hbm [shape: bf16[2,16,16,64], index: 0, kind: input, shape index: {}]
  %s1 = inlined_call_operand.hbm [shape: bf16[2,16,16,64], index: 1, kind: output, shape index: {}]
  %s2 = sld [smem:[#allocation0]]
  $region41: #{tpu_custom_call.1} parent=0
    _
  %s4 = ssub.s32 1, %s2
  %s5 = scalar_select 0, %s4, %s2
  $region1: #{tpu_custom_call.1} parent=0
    #allocation3 [shape = 'u8[131072]{0}', space=vmem, size = 0x20000, scoped, tag = 'input window, operand 0']
    #allocation4 [shape = 's32[2]{0}', space=sflag, size = 0x8, scoped, tag = 'scoped memory for tpu_custom_call.1']
    #allocation5 [shape = 's32[2]{0}', space=sflag, size = 0x8, scoped, tag = 'scoped memory for tpu_custom_call.1']
    #allocation6 [shape = 'u8[131072]{0}', space=vmem, size = 0x20000, scoped, tag = 'output window, operand 0']
    %6 = vsyncpa [#allocation4], 0
    %s7 = scalar_lea.sflag [#allocation4], 1
    %8 = vsyncpa %s7, 0
    %9 = vsyncpa [#allocation5], 0
    %s10 = scalar_lea.sflag [#allocation5], 1
    %11 = vsyncpa %s10, 0
    loop: start=0, step=1, limit=4
    $region2: #{tpu_custom_call.1} parent=1 // loop_pre_header
      _
    $region3: #{tpu_custom_call.1} parent=1 // loop_header
      %s13 = sphi 0, %s17
      %p14 = scmp.ge.s32.totalorder %s13, 4
      %s20 = sphi 0, %s32
      %s21 = sphi 0, %s28
      %s22 = sphi 0, %s20
      %s23 = sphi 0, %s21
      %s24 = sphi 0, %s22
      %s25 = sphi 0, %s23
      %s37 = sphi 0, %s39
      %s40 = sphi 0, %s37
      %s41 = sphi 0, %s40
      %s57 = sphi 0, %s41
      %s65 = sphi 0, %s67
      %s68 = sphi 0, %s65
      %s69 = sphi 0, %s68
      %s85 = sphi 0, %s69
    $region4: #{tpu_custom_call.1} parent=1 // loop_header_branch
      %16 = sbr.rel (%p14) target = $region8
    $region5: #{tpu_custom_call.1} parent=1 // loop_body
      %s18 = ssub.s32 %s13, 1
      %s19 = ssub.s32 %s13, 2
      %s26 = sadd.s32 1, %s21
      %p27 = scmp.ge.s32.totalorder %s26, 1
      %s28 = scalar_select %p27, 0, %s26
      %s29 = sadd.s32 1, %s20
      %s30 = scalar_select %p27, %s29, %s20
      %p31 = scmp.ge.s32.totalorder %s30, 2
      %s32 = scalar_select %p31, 0, %s30
      %s33 = ssub.s32 %s20, %s32
      %s34 = ssub.s32 %s21, %s28
      %s35 = sor.u32 %s33, %s34
      %p36 = scmp.eq.s32.totalorder %s35, 0
      %s38 = sadd.s32 %s37, 1
      %s39 = scalar_select %p36, %s37, %s38
      %p42 = pneg %p36
      %p43 = scmp.eq.s32.totalorder %s13, 1
      %p44 = por %p42, %p43
      %p45 = scmp.ne.s32.totalorder %s37, %s40
      %p46 = scmp.eq.s32.totalorder %s13, 0
      %p47 = por %p45, %p46
      %p48 = scmp.ne.s32.totalorder %s37, %s40
      %p49 = scmp.eq.s32.totalorder %s18, 1
      %p50 = por %p48, %p49
      %p51 = scmp.ne.s32.totalorder %s40, %s41
      %p52 = scmp.eq.s32.totalorder %s18, 0
      %p53 = por %p51, %p52
      %p54 = scmp.ne.s32.totalorder %s40, %s41
      %p55 = scmp.eq.s32.totalorder %s19, 1
      %p56 = por %p54, %p55
      %p58 = scmp.ne.s32.totalorder %s41, %s57
      %p59 = scmp.eq.s32.totalorder %s19, 0
      %p60 = por %p58, %p59
      %s61 = ssub.s32 %s20, %s32
      %s62 = ssub.s32 %s21, %s28
      %s63 = sor.u32 %s61, %s62
      %p64 = scmp.eq.s32.totalorder %s63, 0
      %s66 = sadd.s32 %s65, 1
      %s67 = scalar_select %p64, %s65, %s66
      %p70 = pneg %p64
      %p71 = scmp.eq.s32.totalorder %s13, 1
      %p72 = por %p70, %p71
      %p73 = scmp.ne.s32.totalorder %s65, %s68
      %p74 = scmp.eq.s32.totalorder %s13, 0
      %p75 = por %p73, %p74
      %p76 = scmp.ne.s32.totalorder %s65, %s68
      %p77 = scmp.eq.s32.totalorder %s18, 1
      %p78 = por %p76, %p77
      %p79 = scmp.ne.s32.totalorder %s68, %s69
      %p80 = scmp.eq.s32.totalorder %s18, 0
      %p81 = por %p79, %p80
      %p82 = scmp.ne.s32.totalorder %s68, %s69
      %p83 = scmp.eq.s32.totalorder %s19, 1
      %p84 = por %p82, %p83
      %p86 = scmp.ne.s32.totalorder %s69, %s85
      %p87 = scmp.eq.s32.totalorder %s19, 0
      %p88 = por %p86, %p87
      %p89 = scmp.le.s32.totalorder 1, %s13
      %p90 = scmp.lt.s32.totalorder %s13, 3
      %p91 = pnand %p89, %p90
      %p92 = pneg %p91
      // Predicated region
      $region9: #{tpu_custom_call.1} parent=5 // pred_check
        _
      $region10: #{tpu_custom_call.1} parent=5 // pred_check_branch
        %94 = sbr.rel (%p91) target = $region12
      $region11: #{tpu_custom_call.1} parent=5 // pred_region
        %s95 = ssub.s32 %s13, 1
      $region12: #{tpu_custom_call.1} parent=5 // pred_fallthru
        _
      %p96 = scmp.lt.s32.totalorder %s13, 2
      // Predicated region
      $region13: #{tpu_custom_call.1} parent=5 // pred_check
        %p97 = pneg %p96
      $region14: #{tpu_custom_call.1} parent=5 // pred_check_branch
        %99 = sbr.rel (%p97) target = $region16
      $region15: #{tpu_custom_call.1} parent=5 // pred_region
        // Predicated region
        $region17: #{tpu_custom_call.1} parent=15 // pred_check
          %p100 = pneg %p47
        $region18: #{tpu_custom_call.1} parent=15 // pred_check_branch
          %102 = sbr.rel (%p100) target = $region20
        $region19: #{tpu_custom_call.1} parent=15 // pred_region
          %s103 = sand.u32 %s37, 1
          %s104 = scalar_lea.sflag [#allocation4], %s103
          %s105 = sand.u32 %s37, 1
          %s106 = smul.addr %s105, 128
          %s107 = scalar_lea.vmem [#allocation3], %s106
          %109 = vsyncadd %s104, 0
          %s110 = smul.addr %s20, 32
          %s111 = sadd.s32 %s21, %s110
          %s112 = smul.addr %s111, 4
          %s113 = scalar_lea.hbm %s0, %s112
          %s114 = sshll.u32 %s113, 4
          %s115 = int_to_ptr.hbm [resolvable:$true] %s114
          %s116 = sshll.u32 %s107, 4
          %s117 = int_to_ptr.vmem [resolvable:$true] %s116
          %122 = dma.hbm_to_vmem [thread:$0]  %s115, 2048, %s117, %s104, 64, 64, 4
        $region20: #{tpu_custom_call.1} parent=15 // pred_fallthru
          _
      $region16: #{tpu_custom_call.1} parent=5 // pred_fallthru
        _
      %p123 = scmp.le.s32.totalorder 1, %s13
      %p124 = scmp.lt.s32.totalorder %s13, 3
      %p125 = pnand %p123, %p124
      %p126 = pneg %p125
      // Predicated region
      $region21: #{tpu_custom_call.1} parent=5 // pred_check
        _
      $region22: #{tpu_custom_call.1} parent=5 // pred_check_branch
        %128 = sbr.rel (%p125) target = $region24
      $region23: #{tpu_custom_call.1} parent=5 // pred_region
        %s129 = ssub.s32 %s13, 1
        %s130 = sand.u32 %s40, 1
        %s131 = scalar_lea.sflag [#allocation4], %s130
        %s132 = sand.u32 %s40, 1
        %s133 = smul.addr %s132, 128
        %s134 = scalar_lea.vmem [#allocation3], %s133
        // Predicated region
        $region25: #{tpu_custom_call.1} parent=23 // pred_check
          %p135 = pneg %p53
        $region26: #{tpu_custom_call.1} parent=23 // pred_check_branch
          %137 = sbr.rel (%p135) target = $region28
        $region27: #{tpu_custom_call.1} parent=23 // pred_region
          %139 = dma.done %s131, 2048
        $region28: #{tpu_custom_call.1} parent=23 // pred_fallthru
          _
        %s140 = sand.u32 %s40, 1
        %s141 = scalar_lea.sflag [#allocation4], %s140
        %s142 = sand.u32 %s40, 1
        %s143 = smul.addr %s142, 128
        %s144 = scalar_lea.vmem [#allocation3], %s143
        %p145 = pneg %p53
        %p146 = pneg %p50
        %p147 = pneg %p81
        %p148 = pneg %p78
        %s149 = sand.u32 %s68, 1
        %s150 = scalar_lea.sflag [#allocation5], %s149
        %s151 = sand.u32 %s68, 1
        %s152 = smul.addr %s151, 128
        %s153 = scalar_lea.vmem [#allocation6], %s152
        %vm154 = vcmask 523264
        %155 = vst.msk [vmem:[#allocation2] sm:$0xff] %vm154, 0.0
        %156 = vst.msk [vmem:[#allocation2 + $0x8] sm:$0xff] %vm154, 0.0
        %s157 = scalar_lea.vmem [#allocation2], 272
        %158 = vst.msk [vmem:[%s157] sm:$0xff] %vm154, 0.0
        %159 = vst.msk [vmem:[%s157 + $0x8] sm:$0xff] %vm154, 0.0
        %v160 = vld [vmem:[%s134] sm:$0xf]
        %v161 = vld [vmem:[%s134 + $0x4] sm:$0xf]
        %v162 = vld [vmem:[%s134 + $0x8] sm:$0xf]
        %v163 = vld [vmem:[%s134 + $0xc] sm:$0xf]
        %v164 = vld [vmem:[%s134 + $0x10] sm:$0xf]
        %v165 = vld [vmem:[%s134 + $0x14] sm:$0xf]
        %v166 = vld [vmem:[%s134 + $0x18] sm:$0xf]
        %v167 = vld [vmem:[%s134 + $0x1c] sm:$0xf]
        %v168 = vld [vmem:[%s134 + $0x20] sm:$0xf]
        %v169 = vld [vmem:[%s134 + $0x24] sm:$0xf]
        %v170 = vld [vmem:[%s134 + $0x28] sm:$0xf]
        %v171 = vld [vmem:[%s134 + $0x2c] sm:$0xf]
        %v172 = vld [vmem:[%s134 + $0x30] sm:$0xf]
        %v173 = vld [vmem:[%s134 + $0x34] sm:$0xf]
        %v174 = vld [vmem:[%s134 + $0x38] sm:$0xf]
        %v175 = vld [vmem:[%s134 + $0x3c] sm:$0xf]
        %v176 = vld [vmem:[%s134 + $0x40] sm:$0xf]
        %v177 = vld [vmem:[%s134 + $0x44] sm:$0xf]
        %v178 = vld [vmem:[%s134 + $0x48] sm:$0xf]
        %v179 = vld [vmem:[%s134 + $0x4c] sm:$0xf]
        %v180 = vld [vmem:[%s134 + $0x50] sm:$0xf]
        %v181 = vld [vmem:[%s134 + $0x54] sm:$0xf]
        %v182 = vld [vmem:[%s134 + $0x58] sm:$0xf]
        %v183 = vld [vmem:[%s134 + $0x5c] sm:$0xf]
        %v184 = vld [vmem:[%s134 + $0x60] sm:$0xf]
        %v185 = vld [vmem:[%s134 + $0x64] sm:$0xf]
        %v186 = vld [vmem:[%s134 + $0x68] sm:$0xf]
        %v187 = vld [vmem:[%s134 + $0x6c] sm:$0xf]
        %v188 = vld [vmem:[%s134 + $0x70] sm:$0xf]
        %v189 = vld [vmem:[%s134 + $0x74] sm:$0xf]
        %v190 = vld [vmem:[%s134 + $0x78] sm:$0xf]
        %v191 = vld [vmem:[%s134 + $0x7c] sm:$0xf]
        %v192 = vunpack.c.l.bf16 %v160
        %v193 = vunpack.c.l.bf16 %v161
        %v194 = vunpack.c.l.bf16 %v162
        %v195 = vunpack.c.l.bf16 %v163
        %v196 = vunpack.c.l.bf16 %v164
        %v197 = vunpack.c.l.bf16 %v165
        %v198 = vunpack.c.l.bf16 %v166
        %v199 = vunpack.c.l.bf16 %v167
        %v200 = vunpack.c.l.bf16 %v168
        %v201 = vunpack.c.l.bf16 %v169
        %v202 = vunpack.c.l.bf16 %v170
        %v203 = vunpack.c.l.bf16 %v171
        %v204 = vunpack.c.l.bf16 %v172
        %v205 = vunpack.c.l.bf16 %v173
        %v206 = vunpack.c.l.bf16 %v174
        %v207 = vunpack.c.l.bf16 %v175
        %v208 = vunpack.c.l.bf16 %v176
        %v209 = vunpack.c.l.bf16 %v177
        %v210 = vunpack.c.l.bf16 %v178
        %v211 = vunpack.c.l.bf16 %v179
        %v212 = vunpack.c.l.bf16 %v180
        %v213 = vunpack.c.l.bf16 %v181
        %v214 = vunpack.c.l.bf16 %v182
        %v215 = vunpack.c.l.bf16 %v183
        %v216 = vunpack.c.l.bf16 %v184
        %v217 = vunpack.c.l.bf16 %v185
        %v218 = vunpack.c.l.bf16 %v186
        %v219 = vunpack.c.l.bf16 %v187
        %v220 = vunpack.c.l.bf16 %v188
        %v221 = vunpack.c.l.bf16 %v189
        %v222 = vunpack.c.l.bf16 %v190
        %v223 = vunpack.c.l.bf16 %v191
        %s224 = scalar_lea.vmem [#allocation2], 16
        %225 = vst.msk [vmem:[%s224] sm:$0xff] %vm154, %v192
        %226 = vst.msk [vmem:[%s224 + $0x8] sm:$0xff] %vm154, %v193
        %227 = vst.msk [vmem:[%s224 + $0x10] sm:$0xff] %vm154, %v194
        %228 = vst.msk [vmem:[%s224 + $0x18] sm:$0xff] %vm154, %v195
        %229 = vst.msk [vmem:[%s224 + $0x20] sm:$0xff] %vm154, %v196
        %230 = vst.msk [vmem:[%s224 + $0x28] sm:$0xff] %vm154, %v197
        %231 = vst.msk [vmem:[%s224 + $0x30] sm:$0xff] %vm154, %v198
        %232 = vst.msk [vmem:[%s224 + $0x38] sm:$0xff] %vm154, %v199
        %233 = vst.msk [vmem:[%s224 + $0x40] sm:$0xff] %vm154, %v200
        %234 = vst.msk [vmem:[%s224 + $0x48] sm:$0xff] %vm154, %v201
        %235 = vst.msk [vmem:[%s224 + $0x50] sm:$0xff] %vm154, %v202
        %236 = vst.msk [vmem:[%s224 + $0x58] sm:$0xff] %vm154, %v203
        %237 = vst.msk [vmem:[%s224 + $0x60] sm:$0xff] %vm154, %v204
        %238 = vst.msk [vmem:[%s224 + $0x68] sm:$0xff] %vm154, %v205
        %239 = vst.msk [vmem:[%s224 + $0x70] sm:$0xff] %vm154, %v206
        %240 = vst.msk [vmem:[%s224 + $0x78] sm:$0xff] %vm154, %v207
        %241 = vst.msk [vmem:[%s224 + $0x80] sm:$0xff] %vm154, %v208
        %242 = vst.msk [vmem:[%s224 + $0x88] sm:$0xff] %vm154, %v209
        %243 = vst.msk [vmem:[%s224 + $0x90] sm:$0xff] %vm154, %v210
        %244 = vst.msk [vmem:[%s224 + $0x98] sm:$0xff] %vm154, %v211
        %245 = vst.msk [vmem:[%s224 + $0xa0] sm:$0xff] %vm154, %v212
        %246 = vst.msk [vmem:[%s224 + $0xa8] sm:$0xff] %vm154, %v213
        %247 = vst.msk [vmem:[%s224 + $0xb0] sm:$0xff] %vm154, %v214
        %248 = vst.msk [vmem:[%s224 + $0xb8] sm:$0xff] %vm154, %v215
        %249 = vst.msk [vmem:[%s224 + $0xc0] sm:$0xff] %vm154, %v216
        %250 = vst.msk [vmem:[%s224 + $0xc8] sm:$0xff] %vm154, %v217
        %251 = vst.msk [vmem:[%s224 + $0xd0] sm:$0xff] %vm154, %v218
        %252 = vst.msk [vmem:[%s224 + $0xd8] sm:$0xff] %vm154, %v219
        %253 = vst.msk [vmem:[%s224 + $0xe0] sm:$0xff] %vm154, %v220
        %254 = vst.msk [vmem:[%s224 + $0xe8] sm:$0xff] %vm154, %v221
        %255 = vst.msk [vmem:[%s224 + $0xf0] sm:$0xff] %vm154, %v222
        %256 = vst.msk [vmem:[%s224 + $0xf8] sm:$0xff] %vm154, %v223
        %v257 = vld [vmem:[#allocation2] sm:$0xff]
        %v258 = vld [vmem:[#allocation2 + $0x8] sm:$0xff]
        %v259 = vld [vmem:[#allocation2 + $0x10] sm:$0xff]
        %v260 = vld [vmem:[#allocation2 + $0x18] sm:$0xff]
        %v261 = vld [vmem:[#allocation2 + $0x20] sm:$0xff]
        %v262 = vld [vmem:[#allocation2 + $0x28] sm:$0xff]
        %v263 = vld [vmem:[#allocation2 + $0x30] sm:$0xff]
        %v264 = vld [vmem:[#allocation2 + $0x38] sm:$0xff]
        %v265 = vld [vmem:[#allocation2 + $0x40] sm:$0xff]
        %v266 = vld [vmem:[#allocation2 + $0x48] sm:$0xff]
        %v267 = vld [vmem:[#allocation2 + $0x50] sm:$0xff]
        %v268 = vld [vmem:[#allocation2 + $0x58] sm:$0xff]
        %v269 = vld [vmem:[#allocation2 + $0x60] sm:$0xff]
        %v270 = vld [vmem:[#allocation2 + $0x68] sm:$0xff]
        %v271 = vld [vmem:[#allocation2 + $0x70] sm:$0xff]
        %v272 = vld [vmem:[#allocation2 + $0x78] sm:$0xff]
        %v273 = vld [vmem:[#allocation2 + $0x80] sm:$0xff]
        %v274 = vld [vmem:[#allocation2 + $0x88] sm:$0xff]
        %v275 = vld [vmem:[#allocation2 + $0x90] sm:$0xff]
        %v276 = vld [vmem:[#allocation2 + $0x98] sm:$0xff]
        %v277 = vld [vmem:[#allocation2 + $0xa0] sm:$0xff]
        %v278 = vld [vmem:[#allocation2 + $0xa8] sm:$0xff]
        %v279 = vld [vmem:[#allocation2 + $0xb0] sm:$0xff]
        %v280 = vld [vmem:[#allocation2 + $0xb8] sm:$0xff]
        %v281 = vld [vmem:[#allocation2 + $0xc0] sm:$0xff]
        %v282 = vld [vmem:[#allocation2 + $0xc8] sm:$0xff]
        %v283 = vld [vmem:[#allocation2 + $0xd0] sm:$0xff]
        %v284 = vld [vmem:[#allocation2 + $0xd8] sm:$0xff]
        %v285 = vld [vmem:[#allocation2 + $0xe0] sm:$0xff]
        %v286 = vld [vmem:[#allocation2 + $0xe8] sm:$0xff]
        %v287 = vld [vmem:[#allocation2 + $0xf0] sm:$0xff]
        %v288 = vld [vmem:[#allocation2 + $0xf8] sm:$0xff]
        %v289 = vld [vmem:[#allocation2 + $0x100] sm:$0xff]
        %v290 = vld [vmem:[#allocation2 + $0x108] sm:$0xff]
        %v291 = vld [vmem:[#allocation2 + $0x110] sm:$0xff]
        %v292 = vld [vmem:[#allocation2 + $0x118] sm:$0xff]
        %v293 = vadd.f32 %v257, %v259
        %v294 = vadd.f32 %v258, %v260
        %v295 = vadd.f32 %v259, %v261
        %v296 = vadd.f32 %v260, %v262
        %v297 = vadd.f32 %v261, %v263
        %v298 = vadd.f32 %v262, %v264
        %v299 = vadd.f32 %v263, %v265
        %v300 = vadd.f32 %v264, %v266
        %v301 = vadd.f32 %v265, %v267
        %v302 = vadd.f32 %v266, %v268
        %v303 = vadd.f32 %v267, %v269
        %v304 = vadd.f32 %v268, %v270
        %v305 = vadd.f32 %v269, %v271
        %v306 = vadd.f32 %v270, %v272
        %v307 = vadd.f32 %v271, %v273
        %v308 = vadd.f32 %v272, %v274
        %v309 = vadd.f32 %v273, %v275
        %v310 = vadd.f32 %v274, %v276
        %v311 = vadd.f32 %v275, %v277
        %v312 = vadd.f32 %v276, %v278
        %v313 = vadd.f32 %v277, %v279
        %v314 = vadd.f32 %v278, %v280
        %v315 = vadd.f32 %v279, %v281
        %v316 = vadd.f32 %v280, %v282
        %v317 = vadd.f32 %v281, %v283
        %v318 = vadd.f32 %v282, %v284
        %v319 = vadd.f32 %v283, %v285
        %v320 = vadd.f32 %v284, %v286
        %v321 = vadd.f32 %v285, %v287
        %v322 = vadd.f32 %v286, %v288
        %v323 = vadd.f32 %v287, %v289
        %v324 = vadd.f32 %v288, %v290
        %v325 = vadd.f32 %v293, %v261
        %v326 = vadd.f32 %v294, %v262
        %v327 = vadd.f32 %v295, %v263
        %v328 = vadd.f32 %v296, %v264
        %v329 = vadd.f32 %v297, %v265
        %v330 = vadd.f32 %v298, %v266
        %v331 = vadd.f32 %v299, %v267
        %v332 = vadd.f32 %v300, %v268
        %v333 = vadd.f32 %v301, %v269
        %v334 = vadd.f32 %v302, %v270
        %v335 = vadd.f32 %v303, %v271
        %v336 = vadd.f32 %v304, %v272
        %v337 = vadd.f32 %v305, %v273
        %v338 = vadd.f32 %v306, %v274
        %v339 = vadd.f32 %v307, %v275
        %v340 = vadd.f32 %v308, %v276
        %v341 = vadd.f32 %v309, %v277
        %v342 = vadd.f32 %v310, %v278
        %v343 = vadd.f32 %v311, %v279
        %v344 = vadd.f32 %v312, %v280
        %v345 = vadd.f32 %v313, %v281
        %v346 = vadd.f32 %v314, %v282
        %v347 = vadd.f32 %v315, %v283
        %v348 = vadd.f32 %v316, %v284
        %v349 = vadd.f32 %v317, %v285
        %v350 = vadd.f32 %v318, %v286
        %v351 = vadd.f32 %v319, %v287
        %v352 = vadd.f32 %v320, %v288
        %v353 = vadd.f32 %v321, %v289
        %v354 = vadd.f32 %v322, %v290
        %v355 = vadd.f32 %v323, %v291
        %v356 = vadd.f32 %v324, %v292
        %v357 = vrot.slane %v325, 7
        %v358 = vrot.slane %v327, 7
        %v359 = vrot.slane %v329, 7
        %v360 = vrot.slane %v331, 7
        %v361 = vrot.slane %v333, 7
        %v362 = vrot.slane %v335, 7
        %v363 = vrot.slane %v337, 7
        %v364 = vrot.slane %v339, 7
        %v365 = vrot.slane %v341, 7
        %v366 = vrot.slane %v343, 7
        %v367 = vrot.slane %v345, 7
        %v368 = vrot.slane %v347, 7
        %v369 = vrot.slane %v349, 7
        %v370 = vrot.slane %v351, 7
        %v371 = vrot.slane %v353, 7
        %v372 = vrot.slane %v355, 7
        %v373 = vrot.slane %v326, 7
        %v374 = vrot.slane %v328, 7
        %v375 = vrot.slane %v330, 7
        %v376 = vrot.slane %v332, 7
        %v377 = vrot.slane %v334, 7
        %v378 = vrot.slane %v336, 7
        %v379 = vrot.slane %v338, 7
        %v380 = vrot.slane %v340, 7
        %v381 = vrot.slane %v342, 7
        %v382 = vrot.slane %v344, 7
        %v383 = vrot.slane %v346, 7
        %v384 = vrot.slane %v348, 7
        %v385 = vrot.slane %v350, 7
        %v386 = vrot.slane %v352, 7
        %v387 = vrot.slane %v354, 7
        %v388 = vrot.slane %v356, 7
        %v389 = vlaneseq
        %v390 = vshrl.u32 %v389, 7
        %vm391 = vcmp.lt.s32.totalorder %v390, 1
        %v392 = vsel %vm391, %v357, %v373
        %v393 = vsel %vm391, %v358, %v374
        %v394 = vsel %vm391, %v359, %v375
        %v395 = vsel %vm391, %v360, %v376
        %v396 = vsel %vm391, %v361, %v377
        %v397 = vsel %vm391, %v362, %v378
        %v398 = vsel %vm391, %v363, %v379
        %v399 = vsel %vm391, %v364, %v380
        %v400 = vsel %vm391, %v365, %v381
        %v401 = vsel %vm391, %v366, %v382
        %v402 = vsel %vm391, %v367, %v383
        %v403 = vsel %vm391, %v368, %v384
        %v404 = vsel %vm391, %v369, %v385
        %v405 = vsel %vm391, %v370, %v386
        %v406 = vsel %vm391, %v371, %v387
        %v407 = vsel %vm391, %v372, %v388
        %v408 = vsel %vm391, %v373, %v357
        %v409 = vsel %vm391, %v374, %v358
        %v410 = vsel %vm391, %v375, %v359
        %v411 = vsel %vm391, %v376, %v360
        %v412 = vsel %vm391, %v377, %v361
        %v413 = vsel %vm391, %v378, %v362
        %v414 = vsel %vm391, %v379, %v363
        %v415 = vsel %vm391, %v380, %v364
        %v416 = vsel %vm391, %v381, %v365
        %v417 = vsel %vm391, %v382, %v366
        %v418 = vsel %vm391, %v383, %v367
        %v419 = vsel %vm391, %v384, %v368
        %v420 = vsel %vm391, %v385, %v369
        %v421 = vsel %vm391, %v386, %v370
        %v422 = vsel %vm391, %v387, %v371
        %v423 = vsel %vm391, %v388, %v372
        %v424 = vrot.slane %v325, 1
        %v425 = vrot.slane %v327, 1
        %v426 = vrot.slane %v329, 1
        %v427 = vrot.slane %v331, 1
        %v428 = vrot.slane %v333, 1
        %v429 = vrot.slane %v335, 1
        %v430 = vrot.slane %v337, 1
        %v431 = vrot.slane %v339, 1
        %v432 = vrot.slane %v341, 1
        %v433 = vrot.slane %v343, 1
        %v434 = vrot.slane %v345, 1
        %v435 = vrot.slane %v347, 1
        %v436 = vrot.slane %v349, 1
        %v437 = vrot.slane %v351, 1
        %v438 = vrot.slane %v353, 1
        %v439 = vrot.slane %v355, 1
        %v440 = vrot.slane %v326, 1
        %v441 = vrot.slane %v328, 1
        %v442 = vrot.slane %v330, 1
        %v443 = vrot.slane %v332, 1
        %v444 = vrot.slane %v334, 1
        %v445 = vrot.slane %v336, 1
        %v446 = vrot.slane %v338, 1
        %v447 = vrot.slane %v340, 1
        %v448 = vrot.slane %v342, 1
        %v449 = vrot.slane %v344, 1
        %v450 = vrot.slane %v346, 1
        %v451 = vrot.slane %v348, 1
        %v452 = vrot.slane %v350, 1
        %v453 = vrot.slane %v352, 1
        %v454 = vrot.slane %v354, 1
        %v455 = vrot.slane %v356, 1
        %vm456 = vcmp.lt.s32.totalorder %v390, 7
        %v457 = vsel %vm456, %v424, %v440
        %v458 = vsel %vm456, %v425, %v441
        %v459 = vsel %vm456, %v426, %v442
        %v460 = vsel %vm456, %v427, %v443
        %v461 = vsel %vm456, %v428, %v444
        %v462 = vsel %vm456, %v429, %v445
        %v463 = vsel %vm456, %v430, %v446
        %v464 = vsel %vm456, %v431, %v447
        %v465 = vsel %vm456, %v432, %v448
        %v466 = vsel %vm456, %v433, %v449
        %v467 = vsel %vm456, %v434, %v450
        %v468 = vsel %vm456, %v435, %v451
        %v469 = vsel %vm456, %v436, %v452
        %v470 = vsel %vm456, %v437, %v453
        %v471 = vsel %vm456, %v438, %v454
        %v472 = vsel %vm456, %v439, %v455
        %v473 = vsel %vm456, %v440, %v424
        %v474 = vsel %vm456, %v441, %v425
        %v475 = vsel %vm456, %v442, %v426
        %v476 = vsel %vm456, %v443, %v427
        %v477 = vsel %vm456, %v444, %v428
        %v478 = vsel %vm456, %v445, %v429
        %v479 = vsel %vm456, %v446, %v430
        %v480 = vsel %vm456, %v447, %v431
        %v481 = vsel %vm456, %v448, %v432
        %v482 = vsel %vm456, %v449, %v433
        %v483 = vsel %vm456, %v450, %v434
        %v484 = vsel %vm456, %v451, %v435
        %v485 = vsel %vm456, %v452, %v436
        %v486 = vsel %vm456, %v453, %v437
        %v487 = vsel %vm456, %v454, %v438
        %v488 = vsel %vm456, %v455, %v439
        %v489 = vadd.s32 %v390, 8
        %vm490 = vcmp.eq.s32.totalorder %v390, 0
        %vm491 = vcmp.eq.s32.totalorder %v489, 0
        %v492 = vsel %vm490, 0.0, %v408
        %v493 = vsel %vm491, 0.0, %v392
        %v494 = vsel %vm490, 0.0, %v409
        %v495 = vsel %vm491, 0.0, %v393
        %v496 = vsel %vm490, 0.0, %v410
        %v497 = vsel %vm491, 0.0, %v394
        %v498 = vsel %vm490, 0.0, %v411
        %v499 = vsel %vm491, 0.0, %v395
        %v500 = vsel %vm490, 0.0, %v412
        %v501 = vsel %vm491, 0.0, %v396
        %v502 = vsel %vm490, 0.0, %v413
        %v503 = vsel %vm491, 0.0, %v397
        %v504 = vsel %vm490, 0.0, %v414
        %v505 = vsel %vm491, 0.0, %v398
        %v506 = vsel %vm490, 0.0, %v415
        %v507 = vsel %vm491, 0.0, %v399
        %v508 = vsel %vm490, 0.0, %v416
        %v509 = vsel %vm491, 0.0, %v400
        %v510 = vsel %vm490, 0.0, %v417
        %v511 = vsel %vm491, 0.0, %v401
        %v512 = vsel %vm490, 0.0, %v418
        %v513 = vsel %vm491, 0.0, %v402
        %v514 = vsel %vm490, 0.0, %v419
        %v515 = vsel %vm491, 0.0, %v403
        %v516 = vsel %vm490, 0.0, %v420
        %v517 = vsel %vm491, 0.0, %v404
        %v518 = vsel %vm490, 0.0, %v421
        %v519 = vsel %vm491, 0.0, %v405
        %v520 = vsel %vm490, 0.0, %v422
        %v521 = vsel %vm491, 0.0, %v406
        %v522 = vsel %vm490, 0.0, %v423
        %v523 = vsel %vm491, 0.0, %v407
        %vm524 = vcmp.eq.s32.totalorder %v390, 15
        %vm525 = vcmp.eq.s32.totalorder %v489, 15
        %v526 = vsel %vm524, 0.0, %v457
        %v527 = vsel %vm525, 0.0, %v473
        %v528 = vsel %vm524, 0.0, %v458
        %v529 = vsel %vm525, 0.0, %v474
        %v530 = vsel %vm524, 0.0, %v459
        %v531 = vsel %vm525, 0.0, %v475
        %v532 = vsel %vm524, 0.0, %v460
        %v533 = vsel %vm525, 0.0, %v476
        %v534 = vsel %vm524, 0.0, %v461
        %v535 = vsel %vm525, 0.0, %v477
        %v536 = vsel %vm524, 0.0, %v462
        %v537 = vsel %vm525, 0.0, %v478
        %v538 = vsel %vm524, 0.0, %v463
        %v539 = vsel %vm525, 0.0, %v479
        %v540 = vsel %vm524, 0.0, %v464
        %v541 = vsel %vm525, 0.0, %v480
        %v542 = vsel %vm524, 0.0, %v465
        %v543 = vsel %vm525, 0.0, %v481
        %v544 = vsel %vm524, 0.0, %v466
        %v545 = vsel %vm525, 0.0, %v482
        %v546 = vsel %vm524, 0.0, %v467
        %v547 = vsel %vm525, 0.0, %v483
        %v548 = vsel %vm524, 0.0, %v468
        %v549 = vsel %vm525, 0.0, %v484
        %v550 = vsel %vm524, 0.0, %v469
        %v551 = vsel %vm525, 0.0, %v485
        %v552 = vsel %vm524, 0.0, %v470
        %v553 = vsel %vm525, 0.0, %v486
        %v554 = vsel %vm524, 0.0, %v471
        %v555 = vsel %vm525, 0.0, %v487
        %v556 = vsel %vm524, 0.0, %v472
        %v557 = vsel %vm525, 0.0, %v488
        %v558 = vadd.f32 %v325, %v492
        %v559 = vadd.f32 %v326, %v493
        %v560 = vadd.f32 %v327, %v494
        %v561 = vadd.f32 %v328, %v495
        %v562 = vadd.f32 %v329, %v496
        %v563 = vadd.f32 %v330, %v497
        %v564 = vadd.f32 %v331, %v498
        %v565 = vadd.f32 %v332, %v499
        %v566 = vadd.f32 %v333, %v500
        %v567 = vadd.f32 %v334, %v501
        %v568 = vadd.f32 %v335, %v502
        %v569 = vadd.f32 %v336, %v503
        %v570 = vadd.f32 %v337, %v504
        %v571 = vadd.f32 %v338, %v505
        %v572 = vadd.f32 %v339, %v506
        %v573 = vadd.f32 %v340, %v507
        %v574 = vadd.f32 %v341, %v508
        %v575 = vadd.f32 %v342, %v509
        %v576 = vadd.f32 %v343, %v510
        %v577 = vadd.f32 %v344, %v511
        %v578 = vadd.f32 %v345, %v512
        %v579 = vadd.f32 %v346, %v513
        %v580 = vadd.f32 %v347, %v514
        %v581 = vadd.f32 %v348, %v515
        %v582 = vadd.f32 %v349, %v516
        %v583 = vadd.f32 %v350, %v517
        %v584 = vadd.f32 %v351, %v518
        %v585 = vadd.f32 %v352, %v519
        %v586 = vadd.f32 %v353, %v520
        %v587 = vadd.f32 %v354, %v521
        %v588 = vadd.f32 %v355, %v522
        %v589 = vadd.f32 %v356, %v523
        %v590 = vadd.f32 %v558, %v526
        %v591 = vadd.f32 %v559, %v527
        %v592 = vadd.f32 %v560, %v528
        %v593 = vadd.f32 %v561, %v529
        %v594 = vadd.f32 %v562, %v530
        %v595 = vadd.f32 %v563, %v531
        %v596 = vadd.f32 %v564, %v532
        %v597 = vadd.f32 %v565, %v533
        %v598 = vadd.f32 %v566, %v534
        %v599 = vadd.f32 %v567, %v535
        %v600 = vadd.f32 %v568, %v536
        %v601 = vadd.f32 %v569, %v537
        %v602 = vadd.f32 %v570, %v538
        %v603 = vadd.f32 %v571, %v539
        %v604 = vadd.f32 %v572, %v540
        %v605 = vadd.f32 %v573, %v541
        %v606 = vadd.f32 %v574, %v542
        %v607 = vadd.f32 %v575, %v543
        %v608 = vadd.f32 %v576, %v544
        %v609 = vadd.f32 %v577, %v545
        %v610 = vadd.f32 %v578, %v546
        %v611 = vadd.f32 %v579, %v547
        %v612 = vadd.f32 %v580, %v548
        %v613 = vadd.f32 %v581, %v549
        %v614 = vadd.f32 %v582, %v550
        %v615 = vadd.f32 %v583, %v551
        %v616 = vadd.f32 %v584, %v552
        %v617 = vadd.f32 %v585, %v553
        %v618 = vadd.f32 %v586, %v554
        %v619 = vadd.f32 %v587, %v555
        %v620 = vadd.f32 %v588, %v556
        %v621 = vadd.f32 %v589, %v557
        %v622 = vmul.f32 %v590, 0.11111111
        %v623 = vmul.f32 %v591, 0.11111111
        %v624 = vmul.f32 %v592, 0.11111111
        %v625 = vmul.f32 %v593, 0.11111111
        %v626 = vmul.f32 %v594, 0.11111111
        %v627 = vmul.f32 %v595, 0.11111111
        %v628 = vmul.f32 %v596, 0.11111111
        %v629 = vmul.f32 %v597, 0.11111111
        %v630 = vmul.f32 %v598, 0.11111111
        %v631 = vmul.f32 %v599, 0.11111111
        %v632 = vmul.f32 %v600, 0.11111111
        %v633 = vmul.f32 %v601, 0.11111111
        %v634 = vmul.f32 %v602, 0.11111111
        %v635 = vmul.f32 %v603, 0.11111111
        %v636 = vmul.f32 %v604, 0.11111111
        %v637 = vmul.f32 %v605, 0.11111111
        %v638 = vmul.f32 %v606, 0.11111111
        %v639 = vmul.f32 %v607, 0.11111111
        %v640 = vmul.f32 %v608, 0.11111111
        %v641 = vmul.f32 %v609, 0.11111111
        %v642 = vmul.f32 %v610, 0.11111111
        %v643 = vmul.f32 %v611, 0.11111111
        %v644 = vmul.f32 %v612, 0.11111111
        %v645 = vmul.f32 %v613, 0.11111111
        %v646 = vmul.f32 %v614, 0.11111111
        %v647 = vmul.f32 %v615, 0.11111111
        %v648 = vmul.f32 %v616, 0.11111111
        %v649 = vmul.f32 %v617, 0.11111111
        %v650 = vmul.f32 %v618, 0.11111111
        %v651 = vmul.f32 %v619, 0.11111111
        %v652 = vmul.f32 %v620, 0.11111111
        %v653 = vmul.f32 %v621, 0.11111111
        %v654 = vpack.c.bf16 %v622, %v622
        %v655 = vpack.c.bf16 %v623, %v623
        %v656 = vpack.c.bf16 %v624, %v624
        %v657 = vpack.c.bf16 %v625, %v625
        %v658 = vpack.c.bf16 %v626, %v626
        %v659 = vpack.c.bf16 %v627, %v627
        %v660 = vpack.c.bf16 %v628, %v628
        %v661 = vpack.c.bf16 %v629, %v629
        %v662 = vpack.c.bf16 %v630, %v630
        %v663 = vpack.c.bf16 %v631, %v631
        %v664 = vpack.c.bf16 %v632, %v632
        %v665 = vpack.c.bf16 %v633, %v633
        %v666 = vpack.c.bf16 %v634, %v634
        %v667 = vpack.c.bf16 %v635, %v635
        %v668 = vpack.c.bf16 %v636, %v636
        %v669 = vpack.c.bf16 %v637, %v637
        %v670 = vpack.c.bf16 %v638, %v638
        %v671 = vpack.c.bf16 %v639, %v639
        %v672 = vpack.c.bf16 %v640, %v640
        %v673 = vpack.c.bf16 %v641, %v641
        %v674 = vpack.c.bf16 %v642, %v642
        %v675 = vpack.c.bf16 %v643, %v643
        %v676 = vpack.c.bf16 %v644, %v644
        %v677 = vpack.c.bf16 %v645, %v645
        %v678 = vpack.c.bf16 %v646, %v646
        %v679 = vpack.c.bf16 %v647, %v647
        %v680 = vpack.c.bf16 %v648, %v648
        %v681 = vpack.c.bf16 %v649, %v649
        %v682 = vpack.c.bf16 %v650, %v650
        %v683 = vpack.c.bf16 %v651, %v651
        %v684 = vpack.c.bf16 %v652, %v652
        %v685 = vpack.c.bf16 %v653, %v653
        %vm686 = vcmask 519168
        %687 = vst.msk [vmem:[%s153] sm:$0xf] %vm686, %v654
        %688 = vst.msk [vmem:[%s153 + $0x4] sm:$0xf] %vm686, %v655
        %689 = vst.msk [vmem:[%s153 + $0x8] sm:$0xf] %vm686, %v656
        %690 = vst.msk [vmem:[%s153 + $0xc] sm:$0xf] %vm686, %v657
        %691 = vst.msk [vmem:[%s153 + $0x10] sm:$0xf] %vm686, %v658
        %692 = vst.msk [vmem:[%s153 + $0x14] sm:$0xf] %vm686, %v659
        %693 = vst.msk [vmem:[%s153 + $0x18] sm:$0xf] %vm686, %v660
        %694 = vst.msk [vmem:[%s153 + $0x1c] sm:$0xf] %vm686, %v661
        %695 = vst.msk [vmem:[%s153 + $0x20] sm:$0xf] %vm686, %v662
        %696 = vst.msk [vmem:[%s153 + $0x24] sm:$0xf] %vm686, %v663
        %697 = vst.msk [vmem:[%s153 + $0x28] sm:$0xf] %vm686, %v664
        %698 = vst.msk [vmem:[%s153 + $0x2c] sm:$0xf] %vm686, %v665
        %699 = vst.msk [vmem:[%s153 + $0x30] sm:$0xf] %vm686, %v666
        %700 = vst.msk [vmem:[%s153 + $0x34] sm:$0xf] %vm686, %v667
        %701 = vst.msk [vmem:[%s153 + $0x38] sm:$0xf] %vm686, %v668
        %702 = vst.msk [vmem:[%s153 + $0x3c] sm:$0xf] %vm686, %v669
        %703 = vst.msk [vmem:[%s153 + $0x40] sm:$0xf] %vm686, %v670
        %704 = vst.msk [vmem:[%s153 + $0x44] sm:$0xf] %vm686, %v671
        %705 = vst.msk [vmem:[%s153 + $0x48] sm:$0xf] %vm686, %v672
        %706 = vst.msk [vmem:[%s153 + $0x4c] sm:$0xf] %vm686, %v673
        %707 = vst.msk [vmem:[%s153 + $0x50] sm:$0xf] %vm686, %v674
        %708 = vst.msk [vmem:[%s153 + $0x54] sm:$0xf] %vm686, %v675
        %709 = vst.msk [vmem:[%s153 + $0x58] sm:$0xf] %vm686, %v676
        %710 = vst.msk [vmem:[%s153 + $0x5c] sm:$0xf] %vm686, %v677
        %711 = vst.msk [vmem:[%s153 + $0x60] sm:$0xf] %vm686, %v678
        %712 = vst.msk [vmem:[%s153 + $0x64] sm:$0xf] %vm686, %v679
        %713 = vst.msk [vmem:[%s153 + $0x68] sm:$0xf] %vm686, %v680
        %714 = vst.msk [vmem:[%s153 + $0x6c] sm:$0xf] %vm686, %v681
        %715 = vst.msk [vmem:[%s153 + $0x70] sm:$0xf] %vm686, %v682
        %716 = vst.msk [vmem:[%s153 + $0x74] sm:$0xf] %vm686, %v683
        %717 = vst.msk [vmem:[%s153 + $0x78] sm:$0xf] %vm686, %v684
        %718 = vst.msk [vmem:[%s153 + $0x7c] sm:$0xf] %vm686, %v685
        %s719 = sand.u32 %s68, 1
        %s720 = scalar_lea.sflag [#allocation5], %s719
        %s721 = sand.u32 %s68, 1
        %s722 = smul.addr %s721, 128
        %s723 = scalar_lea.vmem [#allocation6], %s722
        // Predicated region
        $region29: #{tpu_custom_call.1} parent=23 // pred_check
          %p724 = pneg %p78
        $region30: #{tpu_custom_call.1} parent=23 // pred_check_branch
          %726 = sbr.rel (%p724) target = $region32
        $region31: #{tpu_custom_call.1} parent=23 // pred_region
          %728 = vsyncadd %s720, 0
          %s729 = smul.addr %s22, 32
          %s730 = sadd.s32 %s23, %s729
          %s731 = smul.addr %s730, 4
          %s732 = scalar_lea.hbm %s1, %s731
          %s733 = sshll.u32 %s723, 4
          %s734 = int_to_ptr.vmem [resolvable:$true] %s733
          %s735 = sshll.u32 %s732, 4
          %s736 = int_to_ptr.hbm [resolvable:$true] %s735
          %741 = dma.vmem_to_hbm [thread:$0]  %s734, 2048, %s736, %s720, 64, 64, 4
        $region32: #{tpu_custom_call.1} parent=23 // pred_fallthru
          _
      $region24: #{tpu_custom_call.1} parent=5 // pred_fallthru
        _
      %p742 = scmp.le.s32.totalorder 2, %s13
      // Predicated region
      $region33: #{tpu_custom_call.1} parent=5 // pred_check
        %p743 = pneg %p742
      $region34: #{tpu_custom_call.1} parent=5 // pred_check_branch
        %745 = sbr.rel (%p743) target = $region36
      $region35: #{tpu_custom_call.1} parent=5 // pred_region
        %s746 = ssub.s32 %s13, 2
        // Predicated region
        $region37: #{tpu_custom_call.1} parent=35 // pred_check
          %p747 = pneg %p84
        $region38: #{tpu_custom_call.1} parent=35 // pred_check_branch
          %749 = sbr.rel (%p747) target = $region40
        $region39: #{tpu_custom_call.1} parent=35 // pred_region
          %s750 = sand.u32 %s69, 1
          %s751 = scalar_lea.sflag [#allocation5], %s750
          %s752 = sand.u32 %s69, 1
          %s753 = smul.addr %s752, 128
          %s754 = scalar_lea.vmem [#allocation6], %s753
          %756 = dma.done %s751, 2048
        $region40: #{tpu_custom_call.1} parent=35 // pred_fallthru
          _
      $region36: #{tpu_custom_call.1} parent=5 // pred_fallthru
        _
    $region6: #{tpu_custom_call.1} parent=1 // loop_footer
      %s17 = sadd.s32 1, %s13
    $region7: #{tpu_custom_call.1} parent=1 // loop_footer_branch
      %12 = sbr.rel target = $region3
    $region8: #{tpu_custom_call.1} parent=1 // loop_exit
      _
    %757 = vsyncpa [#allocation4], 1
    %s758 = scalar_lea.sflag [#allocation4], 1
    %759 = vsyncpa %s758, 1
    %760 = vsyncpa [#allocation5], 1
    %s761 = scalar_lea.sflag [#allocation5], 1
    %762 = vsyncpa %s761, 1

</llo_original>
